<compile_context>
chip_gen: v7x
topology: tpu7x:2x2x1
jax: 0.10.0
libtpu: 0.0.40
codegen_flags: <defaults>
</compile_context>

<pallas_src>
import jax
import jax.numpy as jnp
from jax.experimental import pallas as pl
from jax.experimental.pallas import tpu as pltpu


def _round_up(x, m):
    return (x + m - 1) // m * m


# ---------------------------------------------------------------------------
# Kernels
# ---------------------------------------------------------------------------
def _ffn_kernel_inplace(x_ref, w1_ref, b1_ref, w2_ref, b2_ref, o_ref):
    """f32 output: the output block doubles as the accumulator (its block
    index is constant across the d_ff reduction axis, so it stays resident in
    VMEM and is written back to HBM once per row tile)."""
    k = pl.program_id(1)

    x = x_ref[...].astype(w1_ref.dtype)  # VPU cast; kernel is MXU/HBM bound
    h = jnp.dot(x, w1_ref[...], preferred_element_type=jnp.float32)
    h = jnp.maximum(h + b1_ref[...], 0.0)
    part = jnp.dot(h.astype(w2_ref.dtype), w2_ref[...],
                   preferred_element_type=jnp.float32)

    @pl.when(k == 0)
    def _init():
        o_ref[...] = part + b2_ref[...]

    @pl.when(k > 0)
    def _accumulate():
        o_ref[...] += part


def _ffn_kernel_scratch(x_ref, w1_ref, b1_ref, w2_ref, b2_ref, o_ref, acc_ref):
    """Non-f32 output: accumulate in an f32 VMEM scratch, cast at finalize."""
    k = pl.program_id(1)

    @pl.when(k == 0)
    def _init():
        acc_ref[...] = jnp.zeros_like(acc_ref)

    x = x_ref[...].astype(w1_ref.dtype)
    h = jnp.dot(x, w1_ref[...], preferred_element_type=jnp.float32)
    h = jnp.maximum(h + b1_ref[...], 0.0)
    acc_ref[...] += jnp.dot(h.astype(w2_ref.dtype), w2_ref[...],
                            preferred_element_type=jnp.float32)

    @pl.when(k == pl.num_programs(1) - 1)
    def _finalize():
        o_ref[...] = (acc_ref[...] + b2_ref[...]).astype(o_ref.dtype)


# ---------------------------------------------------------------------------
# One-time parameter prep (outside the hot path)
# ---------------------------------------------------------------------------
def prepare_ffn_params(w1, b1, w2, b2, *, compute_dtype=jnp.bfloat16,
                       dff_align=256):
    """PyTorch (out_features, in_features) weights -> (in, out) bf16, with d_ff
    zero-padded to a multiple of `dff_align`.  Padded fc1 columns produce
    relu(0 + 0) = 0 and the matching fc2 rows are zero, so results are exact.

    w1: (d_ff, d_model)   b1: (d_ff,)   w2: (d_model, d_ff)   b2: (d_model,)
    """
    d_ff, d_model = w1.shape
    assert w2.shape == (d_model, d_ff)
    d_ff_pad = _round_up(d_ff, dff_align)

    w1_t = jnp.asarray(w1).T.astype(compute_dtype)      # (d_model, d_ff)
    w2_t = jnp.asarray(w2).T.astype(compute_dtype)      # (d_ff, d_model)
    b1_p = jnp.asarray(b1).astype(jnp.float32)
    if d_ff_pad != d_ff:
        pad = d_ff_pad - d_ff
        w1_t = jnp.pad(w1_t, ((0, 0), (0, pad)))
        w2_t = jnp.pad(w2_t, ((0, pad), (0, 0)))
        b1_p = jnp.pad(b1_p, (0, pad))

    b1_2d = b1_p.reshape(1, d_ff_pad)
    b2_2d = jnp.asarray(b2).astype(jnp.float32).reshape(1, d_model)
    return w1_t, b1_2d, w2_t, b2_2d


# ---------------------------------------------------------------------------
# Generation-aware sizing
# ---------------------------------------------------------------------------
def _hw_config():
    """Return (vmem_budget_bytes, tm_pref, want_even_row_tiles)."""
    kind = ""
    try:
        kind = jax.devices()[0].device_kind.lower()
    except Exception:
        pass

    cap = None
    try:
        info = pltpu.get_tpu_info()
        cap = int(getattr(info, "vmem_capacity_bytes", 0)) or None
    except Exception:
        cap = None
    if cap is None:
        if "v5" in kind or "v6" in kind:
            cap = 128 * 1024 * 1024
        else:
            cap = 64 * 1024 * 1024       # conservative default (v7x per-TC)

    budget = int(cap * 0.82)             # leave headroom for compiler scratch
    is_v5e = "v5" in kind
    is_v7 = "v7" in kind
    tm_pref = 512 if is_v5e else 1024    # v5e is already above its roofline at 512
    return budget, tm_pref, is_v7


def _select_tiles(M, d_model, d_ff_pad, x_itemsize, out_itemsize, w_itemsize,
                  budget, tm_pref, want_even_i, use_scratch):
    def vmem_need(tm, tff):
        need = 2 * tm * d_model * x_itemsize          # x block (double buffered)
        need += 2 * d_model * tff * w_itemsize        # w1 slice
        need += 2 * tff * d_model * w_itemsize        # w2 slice
        need += 2 * (tff + d_model) * 4               # bias slices
        need += 2 * tm * d_model * out_itemsize       # output block
        need += tm * tff * 4                          # fc1 activation tile
        if use_scratch:
            need += tm * d_model * 4                  # f32 accumulator
        return need

    # Balanced row tiling: avoid near-doubling the grid when M barely exceeds
    # the preferred tile; keep the last tile nearly full.
    tm_cap = min(tm_pref, _round_up(M, 8))
    num_i = max(1, pl.cdiv(M, tm_cap))
    if want_even_i and num_i > 1 and num_i % 2 == 1:
        num_i += 1                        # 2 TensorCores: even row-tile count
    TM = _round_up(pl.cdiv(M, num_i), 8)

    # d_ff reduction tile: >= 256 (MXU N fill on v6e/v7x), divisor of padded d_ff.
    tff_cands = [t for t in (1024, 512, 256)
                 if t <= d_ff_pad and d_ff_pad % t == 0]
    if not tff_cands:
        tff_cands = [d_ff_pad]

    while True:
        TFF = next((t for t in tff_cands if vmem_need(TM, t) <= budget),
                   tff_cands[-1])
        if vmem_need(TM, TFF) <= budget or TM <= 64:
            break
        TM = max(64, _round_up(TM // 2, 8))
    return TM, TFF


# ---------------------------------------------------------------------------
# Wrapper
# ---------------------------------------------------------------------------
def position_wise_ffn(x, w1_t, b1_2d, w2_t, b2_2d):
    """relu(x @ w1_t + b1) @ w2_t + b2  ==  PyTorch fc2(relu(fc1(x))).

    x     : (B, S, d_model)  any float dtype (streamed as-is, cast in-kernel)
    w1_t  : (d_model, d_ff_pad) bf16     from prepare_ffn_params
    b1_2d : (1, d_ff_pad)       f32
    w2_t  : (d_ff_pad, d_model) bf16
    b2_2d : (1, d_model)        f32
    """
    B, S, d_model = x.shape
    d_ff_pad = w1_t.shape[1]
    M = B * S
    out_dtype = x.dtype

    budget, tm_pref, is_v7 = _hw_config()
    use_scratch = jnp.dtype(out_dtype) != jnp.dtype(jnp.float32)

    x_itemsize = jnp.dtype(x.dtype).itemsize
    w_itemsize = jnp.dtype(w1_t.dtype).itemsize
    out_itemsize = jnp.dtype(out_dtype).itemsize

    TM, TFF = _select_tiles(M, d_model, d_ff_pad, x_itemsize, out_itemsize,
                            w_itemsize, budget, tm_pref, is_v7, use_scratch)

    x2d = x.reshape(M, d_model)           # no pad / no cast / no post-slice
    grid = (pl.cdiv(M, TM), d_ff_pad // TFF)
    num_i = grid[0]

    cost = pl.CostEstimate(
        flops=4 * M * d_model * d_ff_pad,                       # two matmuls
        transcendentals=0,
        bytes_accessed=(M * d_model * x_itemsize                # x
                        + num_i * 2 * d_model * d_ff_pad * w_itemsize  # weights re-streamed per row tile
                        + (d_ff_pad + d_model) * 4              # biases
                        + M * d_model * out_itemsize),          # out
    )

    in_specs = [
        pl.BlockSpec((TM, d_model), lambda i, k: (i, 0)),       # x row tile
        pl.BlockSpec((d_model, TFF), lambda i, k: (0, k)),      # w1 slice
        pl.BlockSpec((1, TFF), lambda i, k: (0, k)),            # b1 slice
        pl.BlockSpec((TFF, d_model), lambda i, k: (k, 0)),      # w2 slice
        pl.BlockSpec((1, d_model), lambda i, k: (0, 0)),        # b2
    ]
    out_spec = pl.BlockSpec((TM, d_model), lambda i, k: (i, 0))

    if use_scratch:
        kernel = _ffn_kernel_scratch
        scratch = [pltpu.VMEM((TM, d_model), jnp.float32)]
    else:
        kernel = _ffn_kernel_inplace
        scratch = []

    out2d = pl.pallas_call(
        kernel,
        out_shape=jax.ShapeDtypeStruct((M, d_model), out_dtype),
        grid_spec=pltpu.PrefetchScalarGridSpec(
            num_scalar_prefetch=0,
            grid=grid,
            in_specs=in_specs,
            out_specs=out_spec,
            scratch_shapes=scratch,
        ),
        compiler_params=pltpu.CompilerParams(
            dimension_semantics=("parallel", "arbitrary"),
            vmem_limit_bytes=budget,
        ),
        cost_estimate=cost,
    )(x2d, w1_t, b1_2d, w2_t, b2_2d)

    return out2d.reshape(B, S, d_model)


if __name__ == "__main__":
    # Small shapes consistent with a Transformer FFN.
    B, S, d_model, d_ff = 2, 8, 32, 64

    key = jax.random.PRNGKey(0)
    kx, k1, k2, k3, k4 = jax.random.split(key, 5)

    x = jax.random.normal(kx, (B, S, d_model), dtype=jnp.float32)
    # PyTorch nn.Linear stores weight as (out_features, in_features).
    w1 = jax.random.normal(k1, (d_ff, d_model), dtype=jnp.float32) * 0.1
    b1 = jax.random.normal(k2, (d_ff,), dtype=jnp.float32) * 0.1
    w2 = jax.random.normal(k3, (d_model, d_ff), dtype=jnp.float32) * 0.1
    b2 = jax.random.normal(k4, (d_model,), dtype=jnp.float32) * 0.1

    # One-time layout / dtype prep OUTSIDE the hot path.
    params = prepare_ffn_params(w1, b1, w2, b2)
    params = jax.block_until_ready(params)

    ffn = jax.jit(position_wise_ffn)
    out = jax.block_until_ready(ffn(x, *params))
    assert out.shape == (B, S, d_model)
    assert out.dtype == x.dtype

    # Reference matching the kernel's numerics (bf16 MXU operands, f32 acc),
    # using the same padded bf16 weights (padding contributes exactly zero).
    w1_t, b1_2d, w2_t, b2_2d = params
    h_ref = jnp.dot(x.astype(jnp.bfloat16), w1_t,
                    preferred_element_type=jnp.float32) + b1_2d
    h_ref = jnp.maximum(h_ref, 0.0)
    ref_bf16 = jnp.dot(h_ref.astype(jnp.bfloat16), w2_t,
                       preferred_element_type=jnp.float32) + b2_2d
    assert jnp.allclose(out, ref_bf16, atol=2e-2, rtol=2e-2), float(
        jnp.max(jnp.abs(out - ref_bf16)))

    # Loose check vs exact f32 PyTorch semantics (bf16 rounding tolerance).
    ref_f32 = jnp.maximum(x @ w1.T + b1, 0.0) @ w2.T + b2
    assert jnp.allclose(out, ref_f32, atol=5e-2, rtol=5e-2), float(
        jnp.max(jnp.abs(out - ref_f32)))

    print("KERNEL_OK")
</pallas_src>

<mosaic_0001>
module attributes {stable_mosaic.version = 11 : i64} {
  func.func @_ffn_kernel_inplace(%arg0: i32, %arg1: i32, %arg2: memref<16x32xf32, #tpu.memory_space<vmem>>, %arg3: memref<32x256xbf16, #tpu.memory_space<vmem>>, %arg4: memref<1x256xf32, #tpu.memory_space<vmem>>, %arg5: memref<256x32xbf16, #tpu.memory_space<vmem>>, %arg6: memref<1x32xf32, #tpu.memory_space<vmem>>, %arg7: memref<16x32xf32, #tpu.memory_space<vmem>>) attributes {dimension_semantics = [#tpu.dimension_semantics<parallel>, #tpu.dimension_semantics<arbitrary>], iteration_bounds = array<i64: 1, 1>, scalar_prefetch = 0 : i64, scratch_operands = 0 : i64, tpu.core_type = #tpu.core_type<tc>, window_params = [{transform_indices = @transform_0, window_bounds = array<i64: 16, 32>}, {transform_indices = @transform_1, window_bounds = array<i64: 32, 256>}, {transform_indices = @transform_2, window_bounds = array<i64: 1, 256>}, {transform_indices = @transform_3, window_bounds = array<i64: 256, 32>}, {pipeline_mode = #tpu.pipeline_mode<synchronous>, transform_indices = @transform_4, window_bounds = array<i64: 1, 32>}, {transform_indices = @transform_5, window_bounds = array<i64: 16, 32>}]} {
    %c0 = arith.constant 0 : index
    %c0_0 = arith.constant 0 : index
    %0 = vector.load %arg2[%c0, %c0_0] : memref<16x32xf32, #tpu.memory_space<vmem>>, vector<16x32xf32>
    %1 = arith.truncf %0 : vector<16x32xf32> to vector<16x32xbf16>
    %c0_1 = arith.constant 0 : index
    %c0_2 = arith.constant 0 : index
    %2 = vector.load %arg3[%c0_1, %c0_2] : memref<32x256xbf16, #tpu.memory_space<vmem>>, vector<32x256xbf16>
    %cst = arith.constant dense<0.000000e+00> : vector<16x256xf32>
    %3 = tpu.matmul %1, %2, %cst {dimension_numbers = #tpu.dot_dimension_numbers<[1], [0], [0], [1], [0, 0, 1, 1], [], []>} : vector<16x32xbf16>, vector<32x256xbf16>, vector<16x256xf32> -> vector<16x256xf32>
    %c0_3 = arith.constant 0 : index
    %c0_4 = arith.constant 0 : index
    %4 = vector.load %arg4[%c0_3, %c0_4] : memref<1x256xf32, #tpu.memory_space<vmem>>, vector<1x256xf32>
    %5 = vector.broadcast %4 : vector<1x256xf32> to vector<16x256xf32>
    %6 = arith.addf %3, %5 : vector<16x256xf32>
    %cst_5 = arith.constant 0.000000e+00 : f32
    %7 = vector.broadcast %cst_5 : f32 to vector<16x256xf32>
    %8 = arith.maximumf %6, %7 : vector<16x256xf32>
    %9 = arith.truncf %8 : vector<16x256xf32> to vector<16x256xbf16>
    %c0_6 = arith.constant 0 : index
    %c0_7 = arith.constant 0 : index
    %10 = vector.load %arg5[%c0_6, %c0_7] : memref<256x32xbf16, #tpu.memory_space<vmem>>, vector<256x32xbf16>
    %cst_8 = arith.constant dense<0.000000e+00> : vector<16x32xf32>
    %11 = tpu.matmul %9, %10, %cst_8 {dimension_numbers = #tpu.dot_dimension_numbers<[1], [0], [0], [1], [0, 0, 1, 1], [], []>} : vector<16x256xbf16>, vector<256x32xbf16>, vector<16x32xf32> -> vector<16x32xf32>
    %c0_i32 = arith.constant 0 : i32
    %12 = arith.cmpi eq, %arg1, %c0_i32 : i32
    %13 = arith.extui %12 : i1 to i32
    %c0_i32_9 = arith.constant 0 : i32
    %14 = arith.cmpi ne, %13, %c0_i32_9 : i32
    scf.if %14 {
      %c0_12 = arith.constant 0 : index
      %c0_13 = arith.constant 0 : index
      %18 = vector.load %arg6[%c0_12, %c0_13] : memref<1x32xf32, #tpu.memory_space<vmem>>, vector<1x32xf32>
      %19 = vector.broadcast %18 : vector<1x32xf32> to vector<16x32xf32>
      %20 = arith.addf %11, %19 : vector<16x32xf32>
      %c0_14 = arith.constant 0 : index
      %c0_15 = arith.constant 0 : index
      %21 = vector.load %arg7[%c0_14, %c0_15] : memref<16x32xf32, #tpu.memory_space<vmem>>, vector<16x32xf32>
      tpu.vector_store %arg7[%c0_14, %c0_15], %20 {strides = array<i32>} : memref<16x32xf32, #tpu.memory_space<vmem>>, vector<16x32xf32>,
    } else {
    }
    %c0_i32_10 = arith.constant 0 : i32
    %15 = arith.cmpi sgt, %arg1, %c0_i32_10 : i32
    %16 = arith.extui %15 : i1 to i32
    %c0_i32_11 = arith.constant 0 : i32
    %17 = arith.cmpi ne, %16, %c0_i32_11 : i32
    scf.if %17 {
      %c0_12 = arith.constant 0 : index
      %c0_13 = arith.constant 0 : index
      %18 = vector.load %arg7[%c0_12, %c0_13] : memref<16x32xf32, #tpu.memory_space<vmem>>, vector<16x32xf32>
      %19 = arith.addf %18, %11 : vector<16x32xf32>
      %c0_14 = arith.constant 0 : index
      %c0_15 = arith.constant 0 : index
      %20 = vector.load %arg7[%c0_14, %c0_15] : memref<16x32xf32, #tpu.memory_space<vmem>>, vector<16x32xf32>
      tpu.vector_store %arg7[%c0_14, %c0_15], %19 {strides = array<i32>} : memref<16x32xf32, #tpu.memory_space<vmem>>, vector<16x32xf32>,
    } else {
    }
    return
  }
  func.func @transform_0(%arg0: i32, %arg1: i32) -> (i32, i32) {
    %c0_i32 = arith.constant 0 : i32
    %c0_i32_0 = arith.constant 0 : i32
    return %arg0, %c0_i32 : i32, i32
  }
  func.func @transform_1(%arg0: i32, %arg1: i32) -> (i32, i32) {
    %c0_i32 = arith.constant 0 : i32
    %c0_i32_0 = arith.constant 0 : i32
    return %c0_i32, %arg1 : i32, i32
  }
  func.func @transform_2(%arg0: i32, %arg1: i32) -> (i32, i32) {
    %c0_i32 = arith.constant 0 : i32
    %c0_i32_0 = arith.constant 0 : i32
    return %c0_i32, %arg1 : i32, i32
  }
  func.func @transform_3(%arg0: i32, %arg1: i32) -> (i32, i32) {
    %c0_i32 = arith.constant 0 : i32
    %c0_i32_0 = arith.constant 0 : i32
    return %arg1, %c0_i32 : i32, i32
  }
  func.func @transform_4(%arg0: i32, %arg1: i32) -> (i32, i32) {
    %c0_i32 = arith.constant 0 : i32
    %c0_i32_0 = arith.constant 0 : i32
    %c0_i32_1 = arith.constant 0 : i32
    return %c0_i32, %c0_i32_0 : i32, i32
  }
  func.func @transform_5(%arg0: i32, %arg1: i32) -> (i32, i32) {
    %c0_i32 = arith.constant 0 : i32
    %c0_i32_0 = arith.constant 0 : i32
    return %arg0, %c0_i32 : i32, i32
  }
}

</mosaic_0001>

<llo_original>
// kernel: position_wise_ffn.1
$region0: #{position_wise_ffn.1}
  #allocation0 [shape = 'u32[]', space=smem, size = 0x4, offset = 0x4, fixed_abs, tag = 'smem constant byte address 0x4 - core index']
  #allocation1 [shape = 'u32[144,128]{1,0:T(1,128)}', space=vmem, size = 0x12000, scoped, tag = 'internal scratch']
  %s0 = inlined_call_operand.vmem [shape: f32[16,32], index: 0, kind: input, shape index: {}]
  %s1 = inlined_call_operand.vmem [shape: bf16[32,256], index: 1, kind: input, shape index: {}]
  %s2 = inlined_call_operand.vmem [shape: f32[1,256], index: 2, kind: input, shape index: {}]
  %s3 = inlined_call_operand.vmem [shape: bf16[256,32], index: 3, kind: input, shape index: {}]
  %s4 = inlined_call_operand.vmem [shape: f32[1,32], index: 4, kind: input, shape index: {}]
  %s5 = inlined_call_operand.hbm [shape: f32[16,32], index: 5, kind: output, shape index: {}]
  %s6 = sld [smem:[#allocation0]]
  $region38: #{position_wise_ffn.1} parent=0
    _
  %s8 = ssub.s32 1, %s6
  %s9 = scalar_select 0, %s8, %s6
  $region1: #{position_wise_ffn.1} parent=0
    #allocation2 [shape = 'u8[8192]{0}', space=vmem, size = 0x2000, scoped, tag = 'output window, operand 0, single buffered']
    #allocation3 [shape = 's32[1]{0}', space=sflag, size = 0x4, scoped, tag = 'scoped memory for position_wise_ffn.1']
    %10 = vsyncpa [#allocation3], 0
    // Predicated region
    $region2: #{position_wise_ffn.1} parent=1 // pred_check
      _
    $region3: #{position_wise_ffn.1} parent=1 // pred_check_branch
      %12 = sbr.rel (0) target = $region5
    $region4: #{position_wise_ffn.1} parent=1 // pred_region
      _
    $region5: #{position_wise_ffn.1} parent=1 // pred_fallthru
      _
    // Predicated region
    $region6: #{position_wise_ffn.1} parent=1 // pred_check
      _
    $region7: #{position_wise_ffn.1} parent=1 // pred_check_branch
      %14 = sbr.rel (0) target = $region9
    $region8: #{position_wise_ffn.1} parent=1 // pred_region
      _
    $region9: #{position_wise_ffn.1} parent=1 // pred_fallthru
      _
    // Predicated region
    $region10: #{position_wise_ffn.1} parent=1 // pred_check
      _
    $region11: #{position_wise_ffn.1} parent=1 // pred_check_branch
      %16 = sbr.rel (0) target = $region13
    $region12: #{position_wise_ffn.1} parent=1 // pred_region
      _
    $region13: #{position_wise_ffn.1} parent=1 // pred_fallthru
      _
    // Predicated region
    $region14: #{position_wise_ffn.1} parent=1 // pred_check
      _
    $region15: #{position_wise_ffn.1} parent=1 // pred_check_branch
      %18 = sbr.rel (0) target = $region17
    $region16: #{position_wise_ffn.1} parent=1 // pred_region
      _
    $region17: #{position_wise_ffn.1} parent=1 // pred_fallthru
      _
    // Predicated region
    $region18: #{position_wise_ffn.1} parent=1 // pred_check
      _
    $region19: #{position_wise_ffn.1} parent=1 // pred_check_branch
      %20 = sbr.rel (0) target = $region21
    $region20: #{position_wise_ffn.1} parent=1 // pred_region
      _
    $region21: #{position_wise_ffn.1} parent=1 // pred_fallthru
      _
    %v22 = vld [vmem:[%s0] sm:$0xff]
    %v23 = vld [vmem:[%s0 + $0x8] sm:$0xff]
    %v24 = vpack.c.bf16 %v23, %v22
    %v25 = vld [vmem:[%s1] sm:$0xff]
    %v26 = vld [vmem:[%s1 + $0x8] sm:$0xff]
    %v27 = vld [vmem:[%s1 + $0x10] sm:$0xff]
    %v28 = vld [vmem:[%s1 + $0x18] sm:$0xff]
    %v29 = vld [vmem:[%s2] sm:$0x3]
    %v31 = vlaneseq
    %v32 = vshrl.u32 %v31, 7
    %v33 = vsub.s32 0, %v32
    %v34 = vrot.slane %v29, %v33
    %v35 = vlaneseq
    %v36 = vshrl.u32 %v35, 7
    %v37 = vsub.s32 1, %v36
    %v38 = vrot.slane %v29, %v37
    %v45 = vunpack.c.l.b16 %v25
    %v46 = vunpack.c.h.b16 %v25
    %v47 = vunpack.c.l.b16 %v26
    %v48 = vunpack.c.h.b16 %v26
    %v49 = vunpack.c.l.b16 %v27
    %v50 = vunpack.c.h.b16 %v27
    %v51 = vunpack.c.l.b16 %v28
    %v52 = vunpack.c.h.b16 %v28
    %v53 = vpack.c.b16 %v47, %v45
    %v54 = vpack.c.b16 %v48, %v46
    %v55 = vpack.c.b16 %v51, %v49
    %v56 = vpack.c.b16 %v52, %v50
    %vm61 = vcmask 261120
    %v63 = vsel %vm61, %v24, 0
    %65 = vmatprep.subr.bf16.mxu0 %v54
    %66 = vmatpush1.bf16.msra.mxu0 %v53
    %67 = vmatprep.subr.bf16.mxu0 %v56
    %68 = vmatpush1.bf16.msra.mxu0 %v55
    %69 = vmatprep.subr.bf16.mxu0 0
    %70 = vmatpush1.bf16.msra.mxu0 0
    %71 = vmatprep.subr.bf16.mxu0 0
    %72 = vmatpush1.bf16.msra.mxu0 0
    %73 = vmatprep.subr.bf16.mxu0 0
    %74 = vmatpush1.bf16.msra.mxu0 0
    %75 = vmatprep.subr.bf16.mxu0 0
    %76 = vmatpush1.bf16.msra.mxu0 0
    %77 = vmatprep.subr.bf16.mxu0 0
    %78 = vmatpush1.bf16.msra.mxu0 0
    %79 = vmatprep.subr.bf16.mxu0 0
    %80 = vmatpush1.bf16.msra.mxu0 0
    %81 = vmatprep.subr.bf16.mxu0 0
    %82 = vmatpush1.bf16.msra.mxu0 0
    %83 = vmatprep.subr.bf16.mxu0 0
    %84 = vmatpush1.bf16.msra.mxu0 0
    %85 = vmatprep.subr.bf16.mxu0 0
    %86 = vmatpush1.bf16.msra.mxu0 0
    %87 = vmatprep.subr.bf16.mxu0 0
    %88 = vmatpush1.bf16.msra.mxu0 0
    %89 = vmatprep.subr.bf16.mxu0 0
    %90 = vmatpush1.bf16.msra.mxu0 0
    %91 = vmatprep.subr.bf16.mxu0 0
    %92 = vmatpush1.bf16.msra.mxu0 0
    %93 = vmatprep.subr.bf16.mxu0 0
    %94 = vmatpush1.bf16.msra.mxu0 0
    %95 = vmatprep.subr.bf16.mxu0 0
    %96 = vmatpush1.bf16.msra.mxu0 0
    %97 = vmatprep.mubr.bf16.mxu0 0
    %98 = vmatmul.mubr.bf16.gmra.mrb[0].mxu0 %v63
    %v99 = vpop.f32.mrb[0].mxu0
    %v100 = vadd.f32 %v34, %v99
    %v101 = vpop.f32.mrb[0].mxu0
    %v102 = vadd.f32 %v38, %v101
    %v103 = vpop.f32.mrb[0].mxu0
    %v104 = vadd.f32 %v34, %v103
    %v105 = vpop.f32.mrb[0].mxu0
    %v106 = vadd.f32 %v38, %v105
    %107 = vdwg.mxu0
    %v108 = vmax.f32 %v100, 0.0
    %v109 = vmax.f32 %v102, 0.0
    %v110 = vmax.f32 %v104, 0.0
    %v111 = vmax.f32 %v106, 0.0
    %v112 = vpack.c.bf16 %v110, %v108
    %v113 = vpack.c.bf16 %v111, %v109
    %v114 = vld [vmem:[%s3] sm:$0xf]
    %v115 = vld [vmem:[%s3 + $0x4] sm:$0xf]
    %v116 = vld [vmem:[%s3 + $0x8] sm:$0xf]
    %v117 = vld [vmem:[%s3 + $0xc] sm:$0xf]
    %v118 = vld [vmem:[%s3 + $0x10] sm:$0xf]
    %v119 = vld [vmem:[%s3 + $0x14] sm:$0xf]
    %v120 = vld [vmem:[%s3 + $0x18] sm:$0xf]
    %v121 = vld [vmem:[%s3 + $0x1c] sm:$0xf]
    %v122 = vld [vmem:[%s3 + $0x20] sm:$0xf]
    %v123 = vld [vmem:[%s3 + $0x24] sm:$0xf]
    %v124 = vld [vmem:[%s3 + $0x28] sm:$0xf]
    %v125 = vld [vmem:[%s3 + $0x2c] sm:$0xf]
    %v126 = vld [vmem:[%s3 + $0x30] sm:$0xf]
    %v127 = vld [vmem:[%s3 + $0x34] sm:$0xf]
    %v128 = vld [vmem:[%s3 + $0x38] sm:$0xf]
    %v129 = vld [vmem:[%s3 + $0x3c] sm:$0xf]
    %v130 = vld [vmem:[%s3 + $0x40] sm:$0xf]
    %v131 = vld [vmem:[%s3 + $0x44] sm:$0xf]
    %v132 = vld [vmem:[%s3 + $0x48] sm:$0xf]
    %v133 = vld [vmem:[%s3 + $0x4c] sm:$0xf]
    %v134 = vld [vmem:[%s3 + $0x50] sm:$0xf]
    %v135 = vld [vmem:[%s3 + $0x54] sm:$0xf]
    %v136 = vld [vmem:[%s3 + $0x58] sm:$0xf]
    %v137 = vld [vmem:[%s3 + $0x5c] sm:$0xf]
    %v138 = vld [vmem:[%s3 + $0x60] sm:$0xf]
    %v139 = vld [vmem:[%s3 + $0x64] sm:$0xf]
    %v140 = vld [vmem:[%s3 + $0x68] sm:$0xf]
    %v141 = vld [vmem:[%s3 + $0x6c] sm:$0xf]
    %v142 = vld [vmem:[%s3 + $0x70] sm:$0xf]
    %v143 = vld [vmem:[%s3 + $0x74] sm:$0xf]
    %v144 = vld [vmem:[%s3 + $0x78] sm:$0xf]
    %v145 = vld [vmem:[%s3 + $0x7c] sm:$0xf]
    %v178 = vunpack.c.l.b16 %v114
    %v179 = vunpack.c.l.b16 %v115
    %v180 = vunpack.c.l.b16 %v116
    %v181 = vunpack.c.l.b16 %v117
    %v182 = vunpack.c.l.b16 %v118
    %v183 = vunpack.c.l.b16 %v119
    %v184 = vunpack.c.l.b16 %v120
    %v185 = vunpack.c.l.b16 %v121
    %v186 = vunpack.c.l.b16 %v122
    %v187 = vunpack.c.l.b16 %v123
    %v188 = vunpack.c.l.b16 %v124
    %v189 = vunpack.c.l.b16 %v125
    %v190 = vunpack.c.l.b16 %v126
    %v191 = vunpack.c.l.b16 %v127
    %v192 = vunpack.c.l.b16 %v128
    %v193 = vunpack.c.l.b16 %v129
    %v194 = vunpack.c.l.b16 %v130
    %v195 = vunpack.c.l.b16 %v131
    %v196 = vunpack.c.l.b16 %v132
    %v197 = vunpack.c.l.b16 %v133
    %v198 = vunpack.c.l.b16 %v134
    %v199 = vunpack.c.l.b16 %v135
    %v200 = vunpack.c.l.b16 %v136
    %v201 = vunpack.c.l.b16 %v137
    %v202 = vunpack.c.l.b16 %v138
    %v203 = vunpack.c.l.b16 %v139
    %v204 = vunpack.c.l.b16 %v140
    %v205 = vunpack.c.l.b16 %v141
    %v206 = vunpack.c.l.b16 %v142
    %v207 = vunpack.c.l.b16 %v143
    %v208 = vunpack.c.l.b16 %v144
    %v209 = vunpack.c.l.b16 %v145
    %v210 = vpack.c.b16 %v179, %v178
    %v211 = vpack.c.b16 %v181, %v180
    %v212 = vpack.c.b16 %v183, %v182
    %v213 = vpack.c.b16 %v185, %v184
    %v214 = vpack.c.b16 %v187, %v186
    %v215 = vpack.c.b16 %v189, %v188
    %v216 = vpack.c.b16 %v191, %v190
    %v217 = vpack.c.b16 %v193, %v192
    %v218 = vpack.c.b16 %v195, %v194
    %v219 = vpack.c.b16 %v197, %v196
    %v220 = vpack.c.b16 %v199, %v198
    %v221 = vpack.c.b16 %v201, %v200
    %v222 = vpack.c.b16 %v203, %v202
    %v223 = vpack.c.b16 %v205, %v204
    %v224 = vpack.c.b16 %v207, %v206
    %v225 = vpack.c.b16 %v209, %v208
    %242 = vmatprep.subr.bf16.mxu0 0
    %243 = vmatpush1.bf16.msra.mxu0 %v210
    %244 = vmatprep.subr.bf16.mxu0 0
    %245 = vmatpush1.bf16.msra.mxu0 %v211
    %246 = vmatprep.subr.bf16.mxu0 0
    %247 = vmatpush1.bf16.msra.mxu0 %v212
    %248 = vmatprep.subr.bf16.mxu0 0
    %249 = vmatpush1.bf16.msra.mxu0 %v213
    %250 = vmatprep.subr.bf16.mxu0 0
    %251 = vmatpush1.bf16.msra.mxu0 %v214
    %252 = vmatprep.subr.bf16.mxu0 0
    %253 = vmatpush1.bf16.msra.mxu0 %v215
    %254 = vmatprep.subr.bf16.mxu0 0
    %255 = vmatpush1.bf16.msra.mxu0 %v216
    %256 = vmatprep.subr.bf16.mxu0 0
    %257 = vmatpush1.bf16.msra.mxu0 %v217
    %258 = vmatprep.subr.bf16.mxu0 0
    %259 = vmatpush1.bf16.msra.mxu0 %v218
    %260 = vmatprep.subr.bf16.mxu0 0
    %261 = vmatpush1.bf16.msra.mxu0 %v219
    %262 = vmatprep.subr.bf16.mxu0 0
    %263 = vmatpush1.bf16.msra.mxu0 %v220
    %264 = vmatprep.subr.bf16.mxu0 0
    %265 = vmatpush1.bf16.msra.mxu0 %v221
    %266 = vmatprep.subr.bf16.mxu0 0
    %267 = vmatpush1.bf16.msra.mxu0 %v222
    %268 = vmatprep.subr.bf16.mxu0 0
    %269 = vmatpush1.bf16.msra.mxu0 %v223
    %270 = vmatprep.subr.bf16.mxu0 0
    %271 = vmatpush1.bf16.msra.mxu0 %v224
    %272 = vmatprep.subr.bf16.mxu0 0
    %273 = vmatpush1.bf16.msra.mxu0 %v225
    %274 = vmatprep.mubr.bf16.mxu0 %v113
    %275 = vmatmul.mubr.bf16.gmra.mrb[0].mxu0 %v112
    %v276 = vpop.f32.mrb[0].mxu0
    %v277 = vadd.f32 0.0, %v276
    %v278 = vpop.f32.mrb[0].mxu0
    %v279 = vpop.f32.mrb[0].mxu0
    %v280 = vadd.f32 0.0, %v279
    %v281 = vpop.f32.mrb[0].mxu0
    %282 = vdwg.mxu0
    %p283 = scmp.eq.s32.totalorder 0, 0
    // Predicated region
    $region22: #{position_wise_ffn.1} parent=1 // pred_check
      %p284 = pneg %p283
    $region23: #{position_wise_ffn.1} parent=1 // pred_check_branch
      %286 = sbr.rel (%p284) target = $region25
    $region24: #{position_wise_ffn.1} parent=1 // pred_region
      %v287 = vld [vmem:[%s4] sm:$0x1]
      %v289 = vlaneseq
      %v290 = vshrl.u32 %v289, 7
      %v291 = vsub.s32 0, %v290
      %v292 = vrot.slane %v287, %v291
      %v294 = vadd.f32 %v277, %v292
      %v295 = vadd.f32 %v280, %v292
      %296 = vst.msk [vmem:[#allocation2] sm:$0xff] %vm61, %v294
      %297 = vst.msk [vmem:[#allocation2 + $0x8] sm:$0xff] %vm61, %v295
    $region25: #{position_wise_ffn.1} parent=1 // pred_fallthru
      _
    %p298 = scmp.gt.s32.totalorder 0, 0
    // Predicated region
    $region26: #{position_wise_ffn.1} parent=1 // pred_check
      %p299 = pneg %p298
    $region27: #{position_wise_ffn.1} parent=1 // pred_check_branch
      %301 = sbr.rel (%p299) target = $region29
    $region28: #{position_wise_ffn.1} parent=1 // pred_region
      %v302 = vld [vmem:[#allocation2] sm:$0xff]
      %v303 = vld [vmem:[#allocation2 + $0x8] sm:$0xff]
      %v304 = vadd.f32 %v302, %v277
      %v305 = vadd.f32 %v303, %v280
      %306 = vst.msk [vmem:[#allocation2] sm:$0xff] %vm61, %v304
      %307 = vst.msk [vmem:[#allocation2 + $0x8] sm:$0xff] %vm61, %v305
    $region29: #{position_wise_ffn.1} parent=1 // pred_fallthru
      _
    // Predicated region
    $region30: #{position_wise_ffn.1} parent=1 // pred_check
      _
    $region31: #{position_wise_ffn.1} parent=1 // pred_check_branch
      %309 = sbr.rel (0) target = $region33
    $region32: #{position_wise_ffn.1} parent=1 // pred_region
      %s311 = ssub.s32 256, 256
      %312 = vsyncadd [#allocation3], %s311
      %s313 = sshll.u32 [#allocation2], 4
      %s314 = int_to_ptr.vmem [resolvable:$true] %s313
      %319 = dma.vmem_to_hbm [thread:$0]  %s314, 256, %s5, [#allocation3], 128, 128, 8
    $region33: #{position_wise_ffn.1} parent=1 // pred_fallthru
      _
    // Predicated region
    $region34: #{position_wise_ffn.1} parent=1 // pred_check
      _
    $region35: #{position_wise_ffn.1} parent=1 // pred_check_branch
      %321 = sbr.rel (0) target = $region37
    $region36: #{position_wise_ffn.1} parent=1 // pred_region
      %322 = dma.done [#allocation3], 256
    $region37: #{position_wise_ffn.1} parent=1 // pred_fallthru
      _
    %323 = vsyncpa [#allocation3], 1

</llo_original>
